<compile_context>
chip_gen: v7x
topology: tpu7x:2x2x1
jax: 0.10.0
libtpu: 0.0.40
codegen_flags: <defaults>
</compile_context>

<pallas_src>
import jax
import jax.numpy as jnp
from jax.experimental import pallas as pl
from jax.experimental.pallas import tpu as pltpu

_LANE = 128
_SUBLANE = 8
_BN_EPS = 1e-5
_TM_MAX = 2048


def _round_up(v, m):
    return ((v + m - 1) // m) * m


def _pick_tm(n):
    """Row-tile size: big tiles to amortize pipeline overhead, but >=2 grid
    blocks for mid/large batches so both v7x TensorCores get work."""
    n8 = _round_up(max(n, 1), _SUBLANE)
    if n8 >= 2 * _TM_MAX:
        return _TM_MAX
    if n8 >= 1024:
        # Split into two balanced row blocks (each >= 512 rows).
        return _round_up(pl.cdiv(n8, 2), _SUBLANE)
    return n8  # small batch: single block


def _mlp_kernel(x_ref, w1_ref, b1_ref, w2_ref, b2_ref, o_ref):
    # x_ref : (TM, C_in)      VMEM, bf16
    # w1_ref: (C_in, H_pad)   VMEM, bf16  (BN1 folded in)
    # b1_ref: (1, H_pad)      VMEM, f32
    # w2_ref: (H_pad, H_pad)  VMEM, bf16  (BN2 folded in)
    # b2_ref: (1, H_pad)      VMEM, f32
    # o_ref : (TM, H_pad)     VMEM
    h = jnp.dot(x_ref[...], w1_ref[...], preferred_element_type=jnp.float32)
    h = jnp.maximum(h + b1_ref[...], 0.0)                       # fc1 + bn1 + relu
    y = jnp.dot(h.astype(w2_ref.dtype), w2_ref[...],
                preferred_element_type=jnp.float32)
    o_ref[...] = jnp.maximum(y + b2_ref[...], 0.0).astype(o_ref.dtype)  # fc2 + bn2 + relu


def fold_and_pad_params(w1, b1, g1, be1, m1, v1,
                        w2, b2, g2, be2, m2, v2,
                        eps=_BN_EPS, compute_dtype=jnp.bfloat16):
    """Fold eval-mode BatchNorm into the linears, transpose to (in, out),
    pad the feature dimension to a multiple of 128, and cast the matmul
    operands to `compute_dtype` (bf16 -> MXU-friendly, f32 accumulation).
    Run ONCE at load time."""
    s1 = g1 / jnp.sqrt(v1 + eps)
    w1f = (w1.T * s1[None, :]).astype(jnp.float32)          # (C_in, H)
    b1f = ((b1 - m1) * s1 + be1).astype(jnp.float32)        # (H,)
    s2 = g2 / jnp.sqrt(v2 + eps)
    w2f = (w2.T * s2[None, :]).astype(jnp.float32)          # (H, H)
    b2f = ((b2 - m2) * s2 + be2).astype(jnp.float32)        # (H,)

    c_in, h = w1f.shape
    h_pad = _round_up(h, _LANE)
    # Padded columns are exactly zero (weights and biases), and ReLU(0)=0,
    # so the padded output columns are guaranteed zero.
    w1p = jnp.zeros((c_in, h_pad), jnp.float32).at[:, :h].set(w1f).astype(compute_dtype)
    b1p = jnp.zeros((1, h_pad), jnp.float32).at[0, :h].set(b1f)
    w2p = jnp.zeros((h_pad, h_pad), jnp.float32).at[:h, :h].set(w2f).astype(compute_dtype)
    b2p = jnp.zeros((1, h_pad), jnp.float32).at[0, :h].set(b2f)
    return (w1p, b1p, w2p, b2p, h)


def mlp_feature_extractor(x, prepared, *, out_dtype=jnp.float32,
                          return_padded=False):
    """Forward pass. x: (N, 4) or (N, ...) flattened to (N, 4).
    Returns (N, 100), or (N, 128) zero-padded if return_padded=True
    (avoids an extra HBM pass for the column slice)."""
    w1p, b1p, w2p, b2p, out_dim = prepared
    n = x.shape[0]
    x2 = x.reshape(n, -1).astype(w1p.dtype)   # bf16 operand for the MXU
    c_in = x2.shape[1]
    h_pad = w1p.shape[1]

    tm = _pick_tm(n)
    grid = (pl.cdiv(n, tm),)                  # last partial block masked by Pallas

    in_bytes = (n * c_in * x2.dtype.itemsize
                + w1p.size * w1p.dtype.itemsize + w2p.size * w2p.dtype.itemsize
                + b1p.size * 4 + b2p.size * 4)
    out_bytes = n * h_pad * jnp.dtype(out_dtype).itemsize
    cost = pl.CostEstimate(
        flops=2 * n * (c_in * h_pad + h_pad * h_pad),
        transcendentals=0,
        bytes_accessed=in_bytes + out_bytes)

    out = pl.pallas_call(
        _mlp_kernel,
        out_shape=jax.ShapeDtypeStruct((n, h_pad), out_dtype),
        grid=grid,
        in_specs=[
            pl.BlockSpec((tm, c_in), lambda i: (i, 0)),      # x rows, tiled
            pl.BlockSpec((c_in, h_pad), lambda i: (0, 0)),   # W1 resident
            pl.BlockSpec((1, h_pad), lambda i: (0, 0)),      # b1 resident
            pl.BlockSpec((h_pad, h_pad), lambda i: (0, 0)),  # W2 resident
            pl.BlockSpec((1, h_pad), lambda i: (0, 0)),      # b2 resident
        ],
        out_specs=pl.BlockSpec((tm, h_pad), lambda i: (i, 0)),
        compiler_params=pltpu.CompilerParams(
            dimension_semantics=("parallel",)),
        cost_estimate=cost,
    )(x2, w1p, b1p, w2p, b2p)

    if return_padded:
        return out                      # (N, 128); cols 100..127 are zero
    return out[:, :out_dim]             # (N, 100) for PyTorch-shape parity


def _ref_forward(x, w1, b1, g1, be1, m1, v1, w2, b2, g2, be2, m2, v2, eps=_BN_EPS):
    x2 = x.reshape(x.shape[0], -1)
    h = x2 @ w1.T + b1
    h = (h - m1) / jnp.sqrt(v1 + eps) * g1 + be1
    h = jnp.maximum(h, 0.0)
    y = h @ w2.T + b2
    y = (y - m2) / jnp.sqrt(v2 + eps) * g2 + be2
    return jnp.maximum(y, 0.0)


if __name__ == "__main__":
    key = jax.random.PRNGKey(0)
    k_x, k_w1, k_w2, k_m1, k_v1, k_m2, k_v2 = jax.random.split(key, 7)

    batch = 8
    in_dim = 4
    hidden = 100

    x = jax.random.normal(k_x, (batch, in_dim), dtype=jnp.float32)

    # nn.Linear weights: kaiming_normal_(a=1) -> std = 1/sqrt(fan_in); bias = 0
    w1 = jax.random.normal(k_w1, (hidden, in_dim), jnp.float32) * (1.0 / in_dim ** 0.5)
    b1 = jnp.zeros((hidden,), jnp.float32)
    w2 = jax.random.normal(k_w2, (hidden, hidden), jnp.float32) * (1.0 / hidden ** 0.5)
    b2 = jnp.zeros((hidden,), jnp.float32)

    # BatchNorm1d params: weight=1, bias=0; non-trivial running stats to exercise the fold.
    g1 = jnp.ones((hidden,), jnp.float32)
    be1 = jnp.zeros((hidden,), jnp.float32)
    m1 = jax.random.normal(k_m1, (hidden,), jnp.float32) * 0.1
    v1 = jax.random.uniform(k_v1, (hidden,), jnp.float32, minval=0.5, maxval=1.5)
    g2 = jnp.ones((hidden,), jnp.float32)
    be2 = jnp.zeros((hidden,), jnp.float32)
    m2 = jax.random.normal(k_m2, (hidden,), jnp.float32) * 0.1
    v2 = jax.random.uniform(k_v2, (hidden,), jnp.float32, minval=0.5, maxval=1.5)

    prepared = fold_and_pad_params(w1, b1, g1, be1, m1, v1,
                                   w2, b2, g2, be2, m2, v2)

    out = mlp_feature_extractor(x, prepared)
    out = jax.block_until_ready(out)

    ref = _ref_forward(x, w1, b1, g1, be1, m1, v1, w2, b2, g2, be2, m2, v2)
    assert out.shape == (batch, hidden)
    # bf16 matmul operands (f32 accumulation) -> relaxed tolerance vs f32 ref.
    assert jnp.allclose(out, ref, atol=3e-2, rtol=3e-2), (
        float(jnp.max(jnp.abs(out - ref))))

    # Padded-output path: extra columns must be exactly zero.
    out_pad = jax.block_until_ready(
        mlp_feature_extractor(x, prepared, return_padded=True))
    assert out_pad.shape == (batch, 128)
    assert jnp.all(out_pad[:, hidden:] == 0.0)

    print("KERNEL_OK")
</pallas_src>

<mosaic_0001>
module attributes {stable_mosaic.version = 11 : i64} {
  func.func @_mlp_kernel(%arg0: i32, %arg1: memref<8x4xbf16, #tpu.memory_space<vmem>>, %arg2: memref<4x128xbf16, #tpu.memory_space<vmem>>, %arg3: memref<1x128xf32, #tpu.memory_space<vmem>>, %arg4: memref<128x128xbf16, #tpu.memory_space<vmem>>, %arg5: memref<1x128xf32, #tpu.memory_space<vmem>>, %arg6: memref<8x128xf32, #tpu.memory_space<vmem>>) attributes {dimension_semantics = [#tpu.dimension_semantics<parallel>], iteration_bounds = array<i64: 1>, scalar_prefetch = 0 : i64, scratch_operands = 0 : i64, tpu.core_type = #tpu.core_type<tc>, window_params = [{transform_indices = @transform_0, window_bounds = array<i64: 8, 4>}, {pipeline_mode = #tpu.pipeline_mode<synchronous>, transform_indices = @transform_1, window_bounds = array<i64: 4, 128>}, {pipeline_mode = #tpu.pipeline_mode<synchronous>, transform_indices = @transform_2, window_bounds = array<i64: 1, 128>}, {pipeline_mode = #tpu.pipeline_mode<synchronous>, transform_indices = @transform_3, window_bounds = array<i64: 128, 128>}, {pipeline_mode = #tpu.pipeline_mode<synchronous>, transform_indices = @transform_4, window_bounds = array<i64: 1, 128>}, {transform_indices = @transform_5, window_bounds = array<i64: 8, 128>}]} {
    %c0 = arith.constant 0 : index
    %c0_0 = arith.constant 0 : index
    %0 = vector.load %arg1[%c0, %c0_0] : memref<8x4xbf16, #tpu.memory_space<vmem>>, vector<8x4xbf16>
    %c0_1 = arith.constant 0 : index
    %c0_2 = arith.constant 0 : index
    %1 = vector.load %arg2[%c0_1, %c0_2] : memref<4x128xbf16, #tpu.memory_space<vmem>>, vector<4x128xbf16>
    %cst = arith.constant dense<0.000000e+00> : vector<8x128xf32>
    %2 = tpu.matmul %0, %1, %cst {dimension_numbers = #tpu.dot_dimension_numbers<[1], [0], [0], [1], [0, 0, 1, 1], [], []>} : vector<8x4xbf16>, vector<4x128xbf16>, vector<8x128xf32> -> vector<8x128xf32>
    %c0_3 = arith.constant 0 : index
    %c0_4 = arith.constant 0 : index
    %3 = vector.load %arg3[%c0_3, %c0_4] : memref<1x128xf32, #tpu.memory_space<vmem>>, vector<1x128xf32>
    %4 = vector.broadcast %3 : vector<1x128xf32> to vector<8x128xf32>
    %5 = arith.addf %2, %4 : vector<8x128xf32>
    %cst_5 = arith.constant 0.000000e+00 : f32
    %6 = vector.broadcast %cst_5 : f32 to vector<8x128xf32>
    %7 = arith.maximumf %5, %6 : vector<8x128xf32>
    %8 = arith.truncf %7 : vector<8x128xf32> to vector<8x128xbf16>
    %c0_6 = arith.constant 0 : index
    %c0_7 = arith.constant 0 : index
    %9 = vector.load %arg4[%c0_6, %c0_7] : memref<128x128xbf16, #tpu.memory_space<vmem>>, vector<128x128xbf16>
    %cst_8 = arith.constant dense<0.000000e+00> : vector<8x128xf32>
    %10 = tpu.matmul %8, %9, %cst_8 {dimension_numbers = #tpu.dot_dimension_numbers<[1], [0], [0], [1], [0, 0, 1, 1], [], []>} : vector<8x128xbf16>, vector<128x128xbf16>, vector<8x128xf32> -> vector<8x128xf32>
    %c0_9 = arith.constant 0 : index
    %c0_10 = arith.constant 0 : index
    %11 = vector.load %arg5[%c0_9, %c0_10] : memref<1x128xf32, #tpu.memory_space<vmem>>, vector<1x128xf32>
    %12 = vector.broadcast %11 : vector<1x128xf32> to vector<8x128xf32>
    %13 = arith.addf %10, %12 : vector<8x128xf32>
    %cst_11 = arith.constant 0.000000e+00 : f32
    %14 = vector.broadcast %cst_11 : f32 to vector<8x128xf32>
    %15 = arith.maximumf %13, %14 : vector<8x128xf32>
    %c0_12 = arith.constant 0 : index
    %c0_13 = arith.constant 0 : index
    %16 = vector.load %arg6[%c0_12, %c0_13] : memref<8x128xf32, #tpu.memory_space<vmem>>, vector<8x128xf32>
    tpu.vector_store %arg6[%c0_12, %c0_13], %15 {strides = array<i32>} : memref<8x128xf32, #tpu.memory_space<vmem>>, vector<8x128xf32>,
    return
  }
  func.func @transform_0(%arg0: i32) -> (i32, i32) {
    %c0_i32 = arith.constant 0 : i32
    %c0_i32_0 = arith.constant 0 : i32
    return %arg0, %c0_i32 : i32, i32
  }
  func.func @transform_1(%arg0: i32) -> (i32, i32) {
    %c0_i32 = arith.constant 0 : i32
    %c0_i32_0 = arith.constant 0 : i32
    %c0_i32_1 = arith.constant 0 : i32
    return %c0_i32, %c0_i32_0 : i32, i32
  }
  func.func @transform_2(%arg0: i32) -> (i32, i32) {
    %c0_i32 = arith.constant 0 : i32
    %c0_i32_0 = arith.constant 0 : i32
    %c0_i32_1 = arith.constant 0 : i32
    return %c0_i32, %c0_i32_0 : i32, i32
  }
  func.func @transform_3(%arg0: i32) -> (i32, i32) {
    %c0_i32 = arith.constant 0 : i32
    %c0_i32_0 = arith.constant 0 : i32
    %c0_i32_1 = arith.constant 0 : i32
    return %c0_i32, %c0_i32_0 : i32, i32
  }
  func.func @transform_4(%arg0: i32) -> (i32, i32) {
    %c0_i32 = arith.constant 0 : i32
    %c0_i32_0 = arith.constant 0 : i32
    %c0_i32_1 = arith.constant 0 : i32
    return %c0_i32, %c0_i32_0 : i32, i32
  }
  func.func @transform_5(%arg0: i32) -> (i32, i32) {
    %c0_i32 = arith.constant 0 : i32
    %c0_i32_0 = arith.constant 0 : i32
    return %arg0, %c0_i32 : i32, i32
  }
}

</mosaic_0001>

<llo_original>
// kernel: tpu_custom_call.1
$region0: #{tpu_custom_call.1}
  #allocation0 [shape = 'u32[]', space=smem, size = 0x4, offset = 0x4, fixed_abs, tag = 'smem constant byte address 0x4 - core index']
  #allocation1 [shape = 'u32[144,128]{1,0:T(1,128)}', space=vmem, size = 0x12000, scoped, tag = 'internal scratch']
  %s0 = inlined_call_operand.vmem [shape: bf16[8,4], index: 0, kind: input, shape index: {}]
  %s1 = inlined_call_operand.vmem [shape: bf16[4,128], index: 1, kind: input, shape index: {}]
  %s2 = inlined_call_operand.vmem [shape: f32[1,128], index: 2, kind: input, shape index: {}]
  %s3 = inlined_call_operand.hbm [shape: bf16[128,128], index: 3, kind: input, shape index: {}]
  %s4 = inlined_call_operand.vmem [shape: f32[1,128], index: 4, kind: input, shape index: {}]
  %s5 = inlined_call_operand.hbm [shape: f32[8,128], index: 5, kind: output, shape index: {}]
  %s6 = sld [smem:[#allocation0]]
  $region34: #{tpu_custom_call.1} parent=0
    _
  %s8 = ssub.s32 1, %s6
  %s9 = scalar_select 0, %s8, %s6
  $region1: #{tpu_custom_call.1} parent=0
    #allocation2 [shape = 'u8[32768]{0}', space=vmem, size = 0x8000, scoped, tag = 'input window, operand 3, single buffered']
    #allocation3 [shape = 's32[1]{0}', space=sflag, size = 0x4, scoped, tag = 'scoped memory for tpu_custom_call.1']
    #allocation4 [shape = 's32[1]{0}', space=sflag, size = 0x4, scoped, tag = 'scoped memory for tpu_custom_call.1']
    #allocation5 [shape = 'u8[4096]{0}', space=vmem, size = 0x1000, scoped, tag = 'output window, operand 0, single buffered']
    %10 = vsyncpa [#allocation3], 0
    %11 = vsyncpa [#allocation4], 0
    // Predicated region
    $region2: #{tpu_custom_call.1} parent=1 // pred_check
      _
    $region3: #{tpu_custom_call.1} parent=1 // pred_check_branch
      %13 = sbr.rel (0) target = $region5
    $region4: #{tpu_custom_call.1} parent=1 // pred_region
      _
    $region5: #{tpu_custom_call.1} parent=1 // pred_fallthru
      _
    // Predicated region
    $region6: #{tpu_custom_call.1} parent=1 // pred_check
      _
    $region7: #{tpu_custom_call.1} parent=1 // pred_check_branch
      %15 = sbr.rel (0) target = $region9
    $region8: #{tpu_custom_call.1} parent=1 // pred_region
      _
    $region9: #{tpu_custom_call.1} parent=1 // pred_fallthru
      _
    // Predicated region
    $region10: #{tpu_custom_call.1} parent=1 // pred_check
      _
    $region11: #{tpu_custom_call.1} parent=1 // pred_check_branch
      %17 = sbr.rel (0) target = $region13
    $region12: #{tpu_custom_call.1} parent=1 // pred_region
      _
    $region13: #{tpu_custom_call.1} parent=1 // pred_fallthru
      _
    // Predicated region
    $region14: #{tpu_custom_call.1} parent=1 // pred_check
      _
    $region15: #{tpu_custom_call.1} parent=1 // pred_check_branch
      %19 = sbr.rel (0) target = $region17
    $region16: #{tpu_custom_call.1} parent=1 // pred_region
      %s21 = ssub.s32 1024, 1024
      %22 = vsyncadd [#allocation3], %s21
      %s23 = sshll.u32 [#allocation2], 4
      %s24 = int_to_ptr.vmem [resolvable:$true] %s23
      %29 = dma.hbm_to_vmem [thread:$0]  %s3, 1024, %s24, [#allocation3], 64, 64, 4
    $region17: #{tpu_custom_call.1} parent=1 // pred_fallthru
      _
    // Predicated region
    $region18: #{tpu_custom_call.1} parent=1 // pred_check
      _
    $region19: #{tpu_custom_call.1} parent=1 // pred_check_branch
      %31 = sbr.rel (0) target = $region21
    $region20: #{tpu_custom_call.1} parent=1 // pred_region
      _
    $region21: #{tpu_custom_call.1} parent=1 // pred_fallthru
      _
    // Predicated region
    $region22: #{tpu_custom_call.1} parent=1 // pred_check
      _
    $region23: #{tpu_custom_call.1} parent=1 // pred_check_branch
      %33 = sbr.rel (0) target = $region25
    $region24: #{tpu_custom_call.1} parent=1 // pred_region
      %34 = dma.done [#allocation3], 1024
    $region25: #{tpu_custom_call.1} parent=1 // pred_fallthru
      _
    %v36 = vld [vmem:[%s0] sm:$0xf]
    %v37 = vld [vmem:[%s1] sm:$0x3]
    %v38 = vld [vmem:[%s2] sm:$0x1]
    %v40 = vlaneseq
    %v41 = vshrl.u32 %v40, 7
    %v42 = vsub.s32 0, %v41
    %v43 = vrot.slane %v38, %v42
    %vm45 = vcmask 31744
    %v47 = vsel %vm45, %v36, 0
    %vm49 = vcmask 1041408
    %v51 = vsel %vm49, %v37, 0
    %53 = vmatprep.subr.bf16.mxu0 0
    %54 = vmatpush1.bf16.msra.mxu0 %v51
    %55 = vmatprep.subr.bf16.mxu0 0
    %56 = vmatpush1.bf16.msra.mxu0 0
    %57 = vmatprep.subr.bf16.mxu0 0
    %58 = vmatpush1.bf16.msra.mxu0 0
    %59 = vmatprep.subr.bf16.mxu0 0
    %60 = vmatpush1.bf16.msra.mxu0 0
    %61 = vmatprep.subr.bf16.mxu0 0
    %62 = vmatpush1.bf16.msra.mxu0 0
    %63 = vmatprep.subr.bf16.mxu0 0
    %64 = vmatpush1.bf16.msra.mxu0 0
    %65 = vmatprep.subr.bf16.mxu0 0
    %66 = vmatpush1.bf16.msra.mxu0 0
    %67 = vmatprep.subr.bf16.mxu0 0
    %68 = vmatpush1.bf16.msra.mxu0 0
    %69 = vmatprep.subr.bf16.mxu0 0
    %70 = vmatpush1.bf16.msra.mxu0 0
    %71 = vmatprep.subr.bf16.mxu0 0
    %72 = vmatpush1.bf16.msra.mxu0 0
    %73 = vmatprep.subr.bf16.mxu0 0
    %74 = vmatpush1.bf16.msra.mxu0 0
    %75 = vmatprep.subr.bf16.mxu0 0
    %76 = vmatpush1.bf16.msra.mxu0 0
    %77 = vmatprep.subr.bf16.mxu0 0
    %78 = vmatpush1.bf16.msra.mxu0 0
    %79 = vmatprep.subr.bf16.mxu0 0
    %80 = vmatpush1.bf16.msra.mxu0 0
    %81 = vmatprep.subr.bf16.mxu0 0
    %82 = vmatpush1.bf16.msra.mxu0 0
    %83 = vmatprep.subr.bf16.mxu0 0
    %84 = vmatpush1.bf16.msra.mxu0 0
    %85 = vmatprep.mubr.bf16.mxu0 0
    %86 = vmatmul.mubr.bf16.gmra.mrb[0].mxu0 %v47
    %v87 = vpop.f32.mrb[0].mxu0
    %v88 = vadd.f32 %v43, %v87
    %v89 = vpop.f32.mrb[0].mxu0
    %v90 = vpop.f32.mrb[0].mxu0
    %v91 = vpop.f32.mrb[0].mxu0
    %92 = vdwg.mxu0
    %v93 = vmax.f32 %v88, 0.0
    %v94 = vpack.c.bf16 %v93, %v93
    %v95 = vld [vmem:[#allocation2] sm:$0xf]
    %v96 = vld [vmem:[#allocation2 + $0x4] sm:$0xf]
    %v97 = vld [vmem:[#allocation2 + $0x8] sm:$0xf]
    %v98 = vld [vmem:[#allocation2 + $0xc] sm:$0xf]
    %v99 = vld [vmem:[#allocation2 + $0x10] sm:$0xf]
    %v100 = vld [vmem:[#allocation2 + $0x14] sm:$0xf]
    %v101 = vld [vmem:[#allocation2 + $0x18] sm:$0xf]
    %v102 = vld [vmem:[#allocation2 + $0x1c] sm:$0xf]
    %v103 = vld [vmem:[#allocation2 + $0x20] sm:$0xf]
    %v104 = vld [vmem:[#allocation2 + $0x24] sm:$0xf]
    %v105 = vld [vmem:[#allocation2 + $0x28] sm:$0xf]
    %v106 = vld [vmem:[#allocation2 + $0x2c] sm:$0xf]
    %v107 = vld [vmem:[#allocation2 + $0x30] sm:$0xf]
    %v108 = vld [vmem:[#allocation2 + $0x34] sm:$0xf]
    %v109 = vld [vmem:[#allocation2 + $0x38] sm:$0xf]
    %v110 = vld [vmem:[#allocation2 + $0x3c] sm:$0xf]
    %v111 = vld [vmem:[%s4] sm:$0x1]
    %v113 = vlaneseq
    %v114 = vshrl.u32 %v113, 7
    %v115 = vsub.s32 0, %v114
    %v116 = vrot.slane %v111, %v115
    %v134 = vunpack.c.l.b16 %v95
    %v135 = vunpack.c.l.b16 %v96
    %v136 = vunpack.c.l.b16 %v97
    %v137 = vunpack.c.l.b16 %v98
    %v138 = vunpack.c.l.b16 %v99
    %v139 = vunpack.c.l.b16 %v100
    %v140 = vunpack.c.l.b16 %v101
    %v141 = vunpack.c.l.b16 %v102
    %v142 = vunpack.c.l.b16 %v103
    %v143 = vunpack.c.l.b16 %v104
    %v144 = vunpack.c.l.b16 %v105
    %v145 = vunpack.c.l.b16 %v106
    %v146 = vunpack.c.l.b16 %v107
    %v147 = vunpack.c.l.b16 %v108
    %v148 = vunpack.c.l.b16 %v109
    %v149 = vunpack.c.l.b16 %v110
    %v150 = vpack.c.b16 %v135, %v134
    %v151 = vpack.c.b16 %v137, %v136
    %v152 = vpack.c.b16 %v139, %v138
    %v153 = vpack.c.b16 %v141, %v140
    %v154 = vpack.c.b16 %v143, %v142
    %v155 = vpack.c.b16 %v145, %v144
    %v156 = vpack.c.b16 %v147, %v146
    %v157 = vpack.c.b16 %v149, %v148
    %166 = vmatprep.subr.bf16.mxu0 0
    %167 = vmatpush1.bf16.msra.mxu0 %v150
    %168 = vmatprep.subr.bf16.mxu0 0
    %169 = vmatpush1.bf16.msra.mxu0 %v151
    %170 = vmatprep.subr.bf16.mxu0 0
    %171 = vmatpush1.bf16.msra.mxu0 %v152
    %172 = vmatprep.subr.bf16.mxu0 0
    %173 = vmatpush1.bf16.msra.mxu0 %v153
    %174 = vmatprep.subr.bf16.mxu0 0
    %175 = vmatpush1.bf16.msra.mxu0 %v154
    %176 = vmatprep.subr.bf16.mxu0 0
    %177 = vmatpush1.bf16.msra.mxu0 %v155
    %178 = vmatprep.subr.bf16.mxu0 0
    %179 = vmatpush1.bf16.msra.mxu0 %v156
    %180 = vmatprep.subr.bf16.mxu0 0
    %181 = vmatpush1.bf16.msra.mxu0 %v157
    %182 = vmatprep.subr.bf16.mxu0 0
    %183 = vmatpush1.bf16.msra.mxu0 0
    %184 = vmatprep.subr.bf16.mxu0 0
    %185 = vmatpush1.bf16.msra.mxu0 0
    %186 = vmatprep.subr.bf16.mxu0 0
    %187 = vmatpush1.bf16.msra.mxu0 0
    %188 = vmatprep.subr.bf16.mxu0 0
    %189 = vmatpush1.bf16.msra.mxu0 0
    %190 = vmatprep.subr.bf16.mxu0 0
    %191 = vmatpush1.bf16.msra.mxu0 0
    %192 = vmatprep.subr.bf16.mxu0 0
    %193 = vmatpush1.bf16.msra.mxu0 0
    %194 = vmatprep.subr.bf16.mxu0 0
    %195 = vmatpush1.bf16.msra.mxu0 0
    %196 = vmatprep.subr.bf16.mxu0 0
    %197 = vmatpush1.bf16.msra.mxu0 0
    %198 = vmatprep.mubr.bf16.mxu0 0
    %199 = vmatmul.mubr.bf16.gmra.mrb[0].mxu0 %v94
    %v200 = vpop.f32.mrb[0].mxu0
    %v201 = vadd.f32 %v116, %v200
    %v202 = vpop.f32.mrb[0].mxu0
    %v203 = vpop.f32.mrb[0].mxu0
    %v204 = vpop.f32.mrb[0].mxu0
    %205 = vdwg.mxu0
    %v206 = vmax.f32 %v201, 0.0
    %207 = vst [vmem:[#allocation5] sm:$0xff] %v206
    // Predicated region
    $region26: #{tpu_custom_call.1} parent=1 // pred_check
      _
    $region27: #{tpu_custom_call.1} parent=1 // pred_check_branch
      %209 = sbr.rel (0) target = $region29
    $region28: #{tpu_custom_call.1} parent=1 // pred_region
      %s211 = ssub.s32 128, 128
      %212 = vsyncadd [#allocation4], %s211
      %s214 = sshll.u32 [#allocation5], 4
      %s215 = int_to_ptr.vmem [resolvable:$true] %s214
      %217 = dma.vmem_to_hbm [thread:$0]  %s215, 128, %s5, [#allocation4]
    $region29: #{tpu_custom_call.1} parent=1 // pred_fallthru
      _
    // Predicated region
    $region30: #{tpu_custom_call.1} parent=1 // pred_check
      _
    $region31: #{tpu_custom_call.1} parent=1 // pred_check_branch
      %219 = sbr.rel (0) target = $region33
    $region32: #{tpu_custom_call.1} parent=1 // pred_region
      %220 = dma.done [#allocation4], 128
    $region33: #{tpu_custom_call.1} parent=1 // pred_fallthru
      _
    %221 = vsyncpa [#allocation3], 1
    %222 = vsyncpa [#allocation4], 1

</llo_original>
